<compile_context>
chip_gen: v6e
topology: v6e:2x2x1
jax: 0.10.0
libtpu: 0.0.40
codegen_flags: <defaults>
</compile_context>

<pallas_src>
import functools

import jax
import jax.numpy as jnp
from jax import lax
from jax.experimental import pallas as pl
from jax.experimental.pallas import tpu as pltpu

_EPS = 1e-12
_TARGET_TILE_BYTES = 2 * 1024 * 1024  # per-input, per-pipeline-buffer VMEM budget


def _round_up(x, m):
    return ((x + m - 1) // m) * m


def _sublane_pack(dtype):
    # rows per packed sublane tile: 8 for 4-byte dtypes, 16 for 2-byte, 32 for 1-byte
    return 8 * max(1, 4 // jnp.dtype(dtype).itemsize)


def _choose_block_rows(n, d, in_dtype, tgt_dtype, block_rows=None):
    pack = max(_sublane_pack(in_dtype), _sublane_pack(tgt_dtype))
    if block_rows is None:
        row_bytes = d * jnp.dtype(in_dtype).itemsize
        tn = (_TARGET_TILE_BYTES // max(1, row_bytes)) // pack * pack
    else:
        tn = _round_up(int(block_rows), pack)
    tn = max(pack, min(tn, _round_up(n, pack)))
    return tn


def _per_row_loss(x1_ref, x2_ref, y_ref, margin):
    x1 = x1_ref[...].astype(jnp.float32)                      # (TN, D)
    x2 = x2_ref[...].astype(jnp.float32)                      # (TN, D)
    dot = jnp.sum(x1 * x2, axis=-1, keepdims=True)            # (TN, 1)
    sq1 = jnp.sum(x1 * x1, axis=-1, keepdims=True) + _EPS
    sq2 = jnp.sum(x2 * x2, axis=-1, keepdims=True) + _EPS
    # rsqrt * rsqrt instead of rsqrt(sq1*sq2): no f32 overflow of the norm product,
    # and the extra EUP op is free (own VLIW slot) in this HBM-bound kernel.
    cos = dot * lax.rsqrt(sq1) * lax.rsqrt(sq2)                # (TN, 1)
    pos = y_ref[...] > 0                                       # native-dtype compare
    return jnp.where(pos, 1.0 - cos, jnp.maximum(cos - margin, 0.0))


def _loss_none_kernel(x1_ref, x2_ref, y_ref, out_ref, *, margin):
    # Edge-tile rows past N are garbage-in, but their writes are masked by Pallas.
    out_ref[...] = _per_row_loss(x1_ref, x2_ref, y_ref, margin).astype(out_ref.dtype)


def _loss_partial_sum_kernel(x1_ref, x2_ref, y_ref, out_ref, *, margin, n_rows, tn):
    loss = _per_row_loss(x1_ref, x2_ref, y_ref, margin)        # (TN, 1)
    row = pl.program_id(0) * tn + lax.broadcasted_iota(jnp.int32, loss.shape, 0)
    loss = jnp.where(row < n_rows, loss, 0.0)                  # mask ragged last tile
    s = jnp.sum(loss, keepdims=True)                           # (1, 1)
    out_ref[...] = jnp.broadcast_to(s, out_ref.shape).astype(out_ref.dtype)


def cosine_embedding_loss(input1, input2, target, margin=0.0, reduction="mean",
                          block_rows=None):
    """JAX/Pallas equivalent of F.cosine_embedding_loss for 2-D inputs."""
    assert input1.shape == input2.shape and input1.ndim == 2
    assert reduction in ("none", "sum", "mean")
    n, d = input1.shape
    y2d = target.reshape(n, 1)  # metadata-only reshape, keep native dtype

    tn = _choose_block_rows(n, d, input1.dtype, y2d.dtype, block_rows)
    num_tiles = pl.cdiv(n, tn)

    in_specs = [
        pl.BlockSpec((tn, d), lambda i: (i, 0)),
        pl.BlockSpec((tn, d), lambda i: (i, 0)),
        pl.BlockSpec((tn, 1), lambda i: (i, 0)),
    ]
    cparams = pltpu.CompilerParams(dimension_semantics=("parallel",))

    if reduction == "none":
        out = pl.pallas_call(
            functools.partial(_loss_none_kernel, margin=float(margin)),
            out_shape=jax.ShapeDtypeStruct((n, 1), jnp.float32),
            grid=(num_tiles,),
            in_specs=in_specs,
            out_specs=pl.BlockSpec((tn, 1), lambda i: (i, 0)),
            compiler_params=cparams,
        )(input1, input2, y2d)
        return out[:, 0]

    # 'sum' / 'mean': one lane-dense partial-sum block per tile (keeps the batch axis
    # "parallel" for v7x megacore); the tiny cross-tile reduction finishes in plain JAX.
    partials = pl.pallas_call(
        functools.partial(_loss_partial_sum_kernel, margin=float(margin),
                          n_rows=n, tn=tn),
        out_shape=jax.ShapeDtypeStruct((num_tiles * 8, 128), jnp.float32),
        grid=(num_tiles,),
        in_specs=in_specs,
        out_specs=pl.BlockSpec((8, 128), lambda i: (i, 0)),
        compiler_params=cparams,
    )(input1, input2, y2d)

    total = jnp.sum(partials[0::8, 0])
    if reduction == "sum":
        return total
    return total / jnp.float32(n)


def _reference(input1, input2, target, margin=0.0, reduction="mean"):
    x1 = input1.astype(jnp.float32)
    x2 = input2.astype(jnp.float32)
    dot = jnp.sum(x1 * x2, axis=-1)
    sq1 = jnp.sum(x1 * x1, axis=-1) + _EPS
    sq2 = jnp.sum(x2 * x2, axis=-1) + _EPS
    cos = dot / jnp.sqrt(sq1 * sq2)
    loss = jnp.where(target > 0, 1.0 - cos, jnp.maximum(cos - margin, 0.0))
    if reduction == "none":
        return loss
    if reduction == "sum":
        return jnp.sum(loss)
    return jnp.mean(loss)


if __name__ == "__main__":
    key = jax.random.PRNGKey(0)
    k1, k2, k3 = jax.random.split(key, 3)
    margin = 0.2

    # Small shapes matching the module's (batch, embedding) signature.
    N, D = 8, 32
    x1 = jax.random.normal(k1, (N, D), dtype=jnp.float32)
    x2 = jax.random.normal(k2, (N, D), dtype=jnp.float32)
    y = jnp.where(jax.random.bernoulli(k3, 0.5, (N,)), 1.0, -1.0).astype(jnp.float32)

    for red in ("mean", "sum", "none"):
        got = cosine_embedding_loss(x1, x2, y, margin=margin, reduction=red)
        jax.block_until_ready(got)
        ref = _reference(x1, x2, y, margin=margin, reduction=red)
        assert jnp.allclose(got, ref, atol=1e-5, rtol=2e-5), (red, got, ref)

    # Exercise the multi-tile pipelined path with a ragged last tile (small block_rows).
    N2, D2 = 200, 32
    a1 = jax.random.normal(k1, (N2, D2), dtype=jnp.float32)
    a2 = jax.random.normal(k2, (N2, D2), dtype=jnp.float32)
    t2 = jnp.where(jax.random.bernoulli(k3, 0.5, (N2,)), 1.0, -1.0).astype(jnp.float32)
    for red in ("mean", "sum", "none"):
        got = cosine_embedding_loss(a1, a2, t2, margin=margin, reduction=red,
                                    block_rows=64)
        jax.block_until_ready(got)
        ref = _reference(a1, a2, t2, margin=margin, reduction=red)
        assert jnp.allclose(got, ref, atol=1e-4, rtol=2e-5), (red, got, ref)

    print("KERNEL_OK")
</pallas_src>

<mosaic_0001>
module attributes {stable_mosaic.version = 11 : i64} {
  func.func @_loss_partial_sum_kernel(%arg0: i32, %arg1: memref<8x32xf32, #tpu.memory_space<vmem>>, %arg2: memref<8x32xf32, #tpu.memory_space<vmem>>, %arg3: memref<8x1xf32, #tpu.memory_space<vmem>>, %arg4: memref<8x128xf32, #tpu.memory_space<vmem>>) attributes {dimension_semantics = [#tpu.dimension_semantics<parallel>], iteration_bounds = array<i64: 1>, scalar_prefetch = 0 : i64, scratch_operands = 0 : i64, tpu.core_type = #tpu.core_type<tc>, window_params = [{transform_indices = @transform_0, window_bounds = array<i64: 8, 32>}, {transform_indices = @transform_1, window_bounds = array<i64: 8, 32>}, {transform_indices = @transform_2, window_bounds = array<i64: 8, 1>}, {transform_indices = @transform_3, window_bounds = array<i64: 8, 128>}]} {
    %c0 = arith.constant 0 : index
    %c0_0 = arith.constant 0 : index
    %0 = vector.load %arg1[%c0, %c0_0] : memref<8x32xf32, #tpu.memory_space<vmem>>, vector<8x32xf32>
    %c0_1 = arith.constant 0 : index
    %c0_2 = arith.constant 0 : index
    %1 = vector.load %arg2[%c0_1, %c0_2] : memref<8x32xf32, #tpu.memory_space<vmem>>, vector<8x32xf32>
    %2 = arith.mulf %0, %1 : vector<8x32xf32>
    %cst = arith.constant dense<0.000000e+00> : vector<8xf32>
    %3 = vector.multi_reduction <add>, %2, %cst [1] : vector<8x32xf32> to vector<8xf32>
    %4 = vector.shape_cast %3 : vector<8xf32> to vector<8x1xf32>
    %5 = arith.mulf %0, %0 : vector<8x32xf32>
    %cst_3 = arith.constant dense<0.000000e+00> : vector<8xf32>
    %6 = vector.multi_reduction <add>, %5, %cst_3 [1] : vector<8x32xf32> to vector<8xf32>
    %7 = vector.shape_cast %6 : vector<8xf32> to vector<8x1xf32>
    %cst_4 = arith.constant 9.99999996E-13 : f32
    %8 = vector.broadcast %cst_4 : f32 to vector<8x1xf32>
    %9 = arith.addf %7, %8 : vector<8x1xf32>
    %10 = arith.mulf %1, %1 : vector<8x32xf32>
    %cst_5 = arith.constant dense<0.000000e+00> : vector<8xf32>
    %11 = vector.multi_reduction <add>, %10, %cst_5 [1] : vector<8x32xf32> to vector<8xf32>
    %12 = vector.shape_cast %11 : vector<8xf32> to vector<8x1xf32>
    %cst_6 = arith.constant 9.99999996E-13 : f32
    %13 = vector.broadcast %cst_6 : f32 to vector<8x1xf32>
    %14 = arith.addf %12, %13 : vector<8x1xf32>
    %15 = math.rsqrt %9 : vector<8x1xf32>
    %16 = arith.mulf %4, %15 : vector<8x1xf32>
    %17 = math.rsqrt %14 : vector<8x1xf32>
    %18 = arith.mulf %16, %17 : vector<8x1xf32>
    %c0_7 = arith.constant 0 : index
    %c0_8 = arith.constant 0 : index
    %19 = vector.load %arg3[%c0_7, %c0_8] : memref<8x1xf32, #tpu.memory_space<vmem>>, vector<8x1xf32>
    %cst_9 = arith.constant 0.000000e+00 : f32
    %20 = vector.broadcast %cst_9 : f32 to vector<8x1xf32>
    %21 = arith.cmpf ogt, %19, %20 : vector<8x1xf32>
    %cst_10 = arith.constant 1.000000e+00 : f32
    %22 = vector.broadcast %cst_10 : f32 to vector<8x1xf32>
    %23 = arith.subf %22, %18 : vector<8x1xf32>
    %cst_11 = arith.constant 2.000000e-01 : f32
    %24 = vector.broadcast %cst_11 : f32 to vector<8x1xf32>
    %25 = arith.subf %18, %24 : vector<8x1xf32>
    %cst_12 = arith.constant 0.000000e+00 : f32
    %26 = vector.broadcast %cst_12 : f32 to vector<8x1xf32>
    %27 = arith.maximumf %25, %26 : vector<8x1xf32>
    %28 = arith.select %21, %23, %27 : vector<8x1xi1>, vector<8x1xf32>
    %c8_i32 = arith.constant 8 : i32
    %29 = arith.muli %arg0, %c8_i32 : i32
    %30 = tpu.iota {dimensions = array<i32: 0>} : vector<8x1xi32>
    %31 = vector.broadcast %29 : i32 to vector<8x1xi32>
    %32 = arith.addi %31, %30 : vector<8x1xi32>
    %c8_i32_13 = arith.constant 8 : i32
    %33 = vector.broadcast %c8_i32_13 : i32 to vector<8x1xi32>
    %34 = arith.cmpi slt, %32, %33 : vector<8x1xi32>
    %cst_14 = arith.constant 0.000000e+00 : f32
    %35 = vector.broadcast %cst_14 : f32 to vector<8x1xf32>
    %36 = arith.select %34, %28, %35 : vector<8x1xi1>, vector<8x1xf32>
    %37 = vector.shape_cast %36 : vector<8x1xf32> to vector<1x8x1xf32>
    %cst_15 = arith.constant dense<0.000000e+00> : vector<1xf32>
    %38 = vector.multi_reduction <add>, %37, %cst_15 [1, 2] : vector<1x8x1xf32> to vector<1xf32>
    %39 = vector.shape_cast %38 : vector<1xf32> to vector<1x1x1xf32>
    %40 = vector.extract %39[0, 0, 0] : f32 from vector<1x1x1xf32>
    %41 = vector.broadcast %40 : f32 to vector<1x1xf32>
    %42 = vector.shape_cast %41 : vector<1x1xf32> to vector<1x1xf32>
    %43 = vector.broadcast %42 : vector<1x1xf32> to vector<8x128xf32>
    %c0_16 = arith.constant 0 : index
    %c0_17 = arith.constant 0 : index
    %44 = vector.load %arg4[%c0_16, %c0_17] : memref<8x128xf32, #tpu.memory_space<vmem>>, vector<8x128xf32>
    tpu.vector_store %arg4[%c0_16, %c0_17], %43 {strides = array<i32>} : memref<8x128xf32, #tpu.memory_space<vmem>>, vector<8x128xf32>,
    return
  }
  func.func @transform_0(%arg0: i32) -> (i32, i32) {
    %c0_i32 = arith.constant 0 : i32
    %c0_i32_0 = arith.constant 0 : i32
    return %arg0, %c0_i32 : i32, i32
  }
  func.func @transform_1(%arg0: i32) -> (i32, i32) {
    %c0_i32 = arith.constant 0 : i32
    %c0_i32_0 = arith.constant 0 : i32
    return %arg0, %c0_i32 : i32, i32
  }
  func.func @transform_2(%arg0: i32) -> (i32, i32) {
    %c0_i32 = arith.constant 0 : i32
    %c0_i32_0 = arith.constant 0 : i32
    return %arg0, %c0_i32 : i32, i32
  }
  func.func @transform_3(%arg0: i32) -> (i32, i32) {
    %c0_i32 = arith.constant 0 : i32
    %c0_i32_0 = arith.constant 0 : i32
    return %arg0, %c0_i32 : i32, i32
  }
}

</mosaic_0001>

<llo_original>
// kernel: tpu_custom_call.1
$region0: #{tpu_custom_call.1}
  #allocation0 [shape = 'u32[]', space=smem, size = 0x4, offset = 0x4, fixed_abs, tag = 'smem constant byte address 0x4 - core index']
  #allocation1 [shape = 'u32[144,128]{1,0:T(1,128)}', space=vmem, size = 0x12000, scoped, tag = 'internal scratch']
  %s0 = inlined_call_operand.vmem [shape: f32[8,32], index: 0, kind: input, shape index: {}]
  %s1 = inlined_call_operand.hbm [shape: f32[8,32], index: 1, kind: input, shape index: {}]
  %s2 = inlined_call_operand.vmem [shape: f32[8,1], index: 2, kind: input, shape index: {}]
  %s3 = inlined_call_operand.hbm [shape: f32[8,128], index: 3, kind: output, shape index: {}]
  %s4 = sld [smem:[#allocation0]]
  $region26: #{tpu_custom_call.1} parent=0
    _
  %s6 = ssub.s32 1, %s4
  %s7 = scalar_select 0, %s6, %s4
  $region1: #{tpu_custom_call.1} parent=0
    #allocation2 [shape = 'u8[4096]{0}', space=vmem, size = 0x1000, scoped, tag = 'input window, operand 1, single buffered']
    #allocation3 [shape = 's32[1]{0}', space=sflag, size = 0x4, scoped, tag = 'scoped memory for tpu_custom_call.1']
    #allocation4 [shape = 's32[1]{0}', space=sflag, size = 0x4, scoped, tag = 'scoped memory for tpu_custom_call.1']
    #allocation5 [shape = 'u8[4096]{0}', space=vmem, size = 0x1000, scoped, tag = 'output window, operand 0, single buffered']
    %8 = vsyncpa [#allocation3], 0
    %9 = vsyncpa [#allocation4], 0
    // Predicated region
    $region2: #{tpu_custom_call.1} parent=1 // pred_check
      _
    $region3: #{tpu_custom_call.1} parent=1 // pred_check_branch
      %11 = sbr.rel (0) target = $region5
    $region4: #{tpu_custom_call.1} parent=1 // pred_region
      _
    $region5: #{tpu_custom_call.1} parent=1 // pred_fallthru
      _
    // Predicated region
    $region6: #{tpu_custom_call.1} parent=1 // pred_check
      _
    $region7: #{tpu_custom_call.1} parent=1 // pred_check_branch
      %13 = sbr.rel (0) target = $region9
    $region8: #{tpu_custom_call.1} parent=1 // pred_region
      %s15 = ssub.s32 128, 128
      %16 = vsyncadd [#allocation3], %s15
      %s18 = sshll.u32 [#allocation2], 4
      %s19 = int_to_ptr.vmem [resolvable:$true] %s18
      %21 = dma.hbm_to_vmem [thread:$0]  %s1, 128, %s19, [#allocation3]
    $region9: #{tpu_custom_call.1} parent=1 // pred_fallthru
      _
    // Predicated region
    $region10: #{tpu_custom_call.1} parent=1 // pred_check
      _
    $region11: #{tpu_custom_call.1} parent=1 // pred_check_branch
      %23 = sbr.rel (0) target = $region13
    $region12: #{tpu_custom_call.1} parent=1 // pred_region
      _
    $region13: #{tpu_custom_call.1} parent=1 // pred_fallthru
      _
    // Predicated region
    $region14: #{tpu_custom_call.1} parent=1 // pred_check
      _
    $region15: #{tpu_custom_call.1} parent=1 // pred_check_branch
      %25 = sbr.rel (0) target = $region17
    $region16: #{tpu_custom_call.1} parent=1 // pred_region
      %26 = dma.done [#allocation3], 128
    $region17: #{tpu_custom_call.1} parent=1 // pred_fallthru
      _
    %v27 = vld [vmem:[%s0] sm:$0xff]
    %v28 = vld [vmem:[#allocation2] sm:$0xff]
    %v29 = vmul.f32 %v27, %v28
    %vm30 = vcmask 261120
    %v31 = vsel %vm30, %v29, 0.0
    %32 = vadd.xlane.f32.xlu0 %v31
    %v33 = vpop.xlane.xlu0 %32
    %v34 = vmul.f32 %v27, %v27
    %v35 = vsel %vm30, %v34, 0.0
    %36 = vadd.xlane.f32.xlu0 %v35
    %v37 = vpop.xlane.xlu0 %36
    %v38 = vadd.f32 %v37, 1e-12
    %v39 = vmul.f32 %v28, %v28
    %v40 = vsel %vm30, %v39, 0.0
    %41 = vadd.xlane.f32.xlu0 %v40
    %v42 = vpop.xlane.xlu0 %41
    %v43 = vadd.f32 %v42, 1e-12
    %v44 = vrsqrt.pop %v38
    %v45 = vmul.f32 %v33, %v44
    %v46 = vrsqrt.pop %v43
    %v47 = vmul.f32 %v45, %v46
    %v48 = vld [vmem:[%s2] sm:$0xff]
    %vm49 = vcmp.gt.f32.partialorder %v48, 0.0
    %v50 = vsub.f32 1.0, %v47
    %v51 = vsub.f32 %v47, 0.2
    %v52 = vmax.f32 %v51, 0.0
    %v53 = vsel %vm49, %v50, %v52
    %s54 = smul.u32 0, 8
    %v55 = vlaneseq
    %v56 = vshrl.u32 %v55, 7
    %v57 = vstv %s54
    %v58 = vadd.s32 %v57, %v56
    %vm59 = vcmp.lt.s32.totalorder %v58, 8
    %v60 = vsel %vm59, %v53, 0.0
    %vm61 = vcmask 7168
    %v62 = vsel %vm61, %v60, 0.0
    %63 = vadd.xlane.f32.xlu0 %v62
    %v64 = vpop.xlane.xlu0 %63
    %v65 = vrot.slane %v64, 4
    %v66 = vadd.f32 %v64, %v65
    %v67 = vrot.slane %v66, 2
    %v68 = vadd.f32 %v66, %v67
    %v69 = vrot.slane %v68, 1
    %v70 = vadd.f32 %v68, %v69
    %s71 = vtos %v70
    %v72 = vstv %s71
    %73 = vst [vmem:[#allocation5] sm:$0xff] %v72
    // Predicated region
    $region18: #{tpu_custom_call.1} parent=1 // pred_check
      _
    $region19: #{tpu_custom_call.1} parent=1 // pred_check_branch
      %75 = sbr.rel (0) target = $region21
    $region20: #{tpu_custom_call.1} parent=1 // pred_region
      %s77 = ssub.s32 128, 128
      %78 = vsyncadd [#allocation4], %s77
      %s80 = sshll.u32 [#allocation5], 4
      %s81 = int_to_ptr.vmem [resolvable:$true] %s80
      %83 = dma.vmem_to_hbm [thread:$0]  %s81, 128, %s3, [#allocation4]
    $region21: #{tpu_custom_call.1} parent=1 // pred_fallthru
      _
    // Predicated region
    $region22: #{tpu_custom_call.1} parent=1 // pred_check
      _
    $region23: #{tpu_custom_call.1} parent=1 // pred_check_branch
      %85 = sbr.rel (0) target = $region25
    $region24: #{tpu_custom_call.1} parent=1 // pred_region
      %86 = dma.done [#allocation4], 128
    $region25: #{tpu_custom_call.1} parent=1 // pred_fallthru
      _
    %87 = vsyncpa [#allocation3], 1
    %88 = vsyncpa [#allocation4], 1

</llo_original>
